<compile_context>
chip_gen: v7x
topology: tpu7x:2x2x1
jax: 0.10.0
libtpu: 0.0.40
codegen_flags: <defaults>
</compile_context>

<pallas_src>
import jax
import jax.numpy as jnp
from jax.experimental import pallas as pl
from jax.experimental.pallas import tpu as pltpu


def _round_up(x, m):
    return ((x + m - 1) // m) * m


def _block_diag(blocks):
    rows = sum(b.shape[0] for b in blocks)
    cols = sum(b.shape[1] for b in blocks)
    out = jnp.zeros((rows, cols), blocks[0].dtype)
    r = c = 0
    for b in blocks:
        out = out.at[r:r + b.shape[0], c:c + b.shape[1]].set(b)
        r += b.shape[0]
        c += b.shape[1]
    return out


def _choose_tm(n, tm):
    """Row tile: multiple of 128, clamped to n, and >= 2 grid steps if possible."""
    n128 = _round_up(max(n, 1), 128)
    tm = max(128, min(_round_up(tm, 128), n128))
    half = _round_up((n128 + 1) // 2, 128)
    if n128 >= 256 and tm > half:   # keep >= 2 steps so v7x's 2nd TC has work
        tm = half
    return tm


# ---------------------------------------------------------------------------
# Kernel
# ---------------------------------------------------------------------------
def _link_predictor_kernel(x_ref, wbd_ref, brow_ref, vcol_ref, bias_ref,
                           out_ref):
    # x_ref:    (tm, F)       packed [x_src | t_src | x_dst | t_dst] row tile
    # wbd_ref:  (F, 4*nhid)   block-diagonal BN-folded weight
    # brow_ref: (1, 4*nhid)   folded biases (linear bias + BN shift), f32
    # vcol_ref: (4*nhid, 1)   folded output head (lino1/lino2, /2, weight mix)
    # bias_ref: (1, 1)        folded output bias 0.5*(b1+b2), f32
    # out_ref:  (tm, 1)       f32 output column

    # All four branch linears in one block-diagonal MXU matmul (f32 accum).
    h = jnp.dot(x_ref[...], wbd_ref[...], preferred_element_type=jnp.float32)
    h = jnp.maximum(h + brow_ref[...], 0.0)               # BN folded in; ReLU

    # Folded output head as a second MXU matmul (keeps the VPU nearly idle).
    out = jnp.dot(h.astype(vcol_ref.dtype), vcol_ref[...],
                  preferred_element_type=jnp.float32) + bias_ref[...]
    out_ref[...] = out.astype(out_ref.dtype)


# ---------------------------------------------------------------------------
# Parameter init (mimics nn.Linear / eval-mode nn.BatchNorm1d)
# ---------------------------------------------------------------------------
def init_params(key, nfeat, ntebd, nhid):
    ks = jax.random.split(key, 10)

    def linear(k, fan_in, fan_out):
        kw, kb = jax.random.split(k)
        bound = 1.0 / jnp.sqrt(jnp.float32(fan_in))
        w = jax.random.uniform(kw, (fan_in, fan_out), jnp.float32, -bound, bound)
        b = jax.random.uniform(kb, (1, fan_out), jnp.float32, -bound, bound)
        return w, b

    def bn(k, eps=1e-5):
        # Randomized eval-mode BN stats/affine so the host-side fold is actually
        # exercised (a freshly reset BatchNorm1d is gamma=1, beta=0, mean=0, var=1).
        kg, kb, km, kv = jax.random.split(k, 4)
        gamma = jax.random.uniform(kg, (1, nhid), jnp.float32, 0.5, 1.5)
        beta = 0.1 * jax.random.normal(kb, (1, nhid), jnp.float32)
        mean = 0.1 * jax.random.normal(km, (1, nhid), jnp.float32)
        var = jax.random.uniform(kv, (1, nhid), jnp.float32, 0.5, 1.5)
        scale = gamma / jnp.sqrt(var + eps)
        shift = beta - mean * scale
        return scale, shift

    return {
        "x1": linear(ks[0], nfeat, nhid),
        "t1": linear(ks[1], ntebd, nhid),
        "x2": linear(ks[2], nfeat, nhid),
        "t2": linear(ks[3], ntebd, nhid),
        "o1": linear(ks[4], 2 * nhid, 1),
        "o2": linear(ks[5], 2 * nhid, 1),
        "bn_x1": bn(ks[6]),
        "bn_t1": bn(ks[7]),
        "bn_x2": bn(ks[8]),
        "bn_t2": bn(ks[9]),
    }


# ---------------------------------------------------------------------------
# Host-side folding: BN + biases + output head + weight-mix
# ---------------------------------------------------------------------------
def _fold_params(params, weight, compute_dtype):
    nhid = params["x1"][0].shape[1]

    def fold_bn(lin, bn):
        w, b = lin           # (fan_in, nhid), (1, nhid)
        scale, shift = bn    # (1, nhid) each (eval-mode BN is per-feature affine)
        return w * scale, b * scale + shift

    folded = [fold_bn(params[k], params["bn_" + k])
              for k in ("x1", "t1", "x2", "t2")]
    wbd = _block_diag([f[0] for f in folded]).astype(compute_dtype)  # (F, 4*nhid)
    brow = jnp.concatenate([f[1] for f in folded], axis=1)           # (1, 4*nhid)

    # (lino1(ho1) + lino2(ho2)) / 2 with ho1=[h_src|h_dst], ho2=[h_dst|h_src]
    #   = h_src @ a + h_dst @ c + 0.5*(b1+b2)
    # and h_{src,dst} = (1-weight)*hx_* + weight*ht_*  folds into vcol below.
    w1, b1 = params["o1"]
    w2, b2 = params["o2"]
    a = 0.5 * (w1[:nhid] + w2[nhid:])                    # (nhid, 1)
    c = 0.5 * (w1[nhid:] + w2[:nhid])                    # (nhid, 1)
    w = jnp.asarray(weight, jnp.float32)
    vcol = jnp.concatenate([(1.0 - w) * a, w * a,
                            (1.0 - w) * c, w * c], axis=0)           # (4*nhid, 1)
    bias = (0.5 * (b1 + b2)).astype(jnp.float32)                     # (1, 1)
    return wbd, brow.astype(jnp.float32), vcol.astype(compute_dtype), bias


# ---------------------------------------------------------------------------
# Wrapper
# ---------------------------------------------------------------------------
def link_predictor_forward(params, x_src, t_src, x_dst, t_dst, *,
                           weight=1.0, tm=8192, compute_dtype=jnp.bfloat16):
    n = x_src.shape[0]
    nhid = params["x1"][0].shape[1]
    h4 = 4 * nhid

    wbd, brow, vcol, bias = _fold_params(params, weight, compute_dtype)
    feat = wbd.shape[0]          # F = 2*(nfeat + ntebd)

    tm = _choose_tm(n, tm)
    n_pad = _round_up(n, tm)

    # Single row-major pack: concat + cast (+ tail pad) fuse into one HBM pass
    # under jit; no transpose.  The kernel reads (tm, F) row tiles directly.
    x = jnp.concatenate([x_src, t_src, x_dst, t_dst], axis=1).astype(compute_dtype)
    if n_pad != n:
        x = jnp.pad(x, ((0, n_pad - n), (0, 0)))

    out = pl.pallas_call(
        _link_predictor_kernel,
        out_shape=jax.ShapeDtypeStruct((n_pad, 1), jnp.float32),
        grid=(n_pad // tm,),
        in_specs=[
            pl.BlockSpec((tm, feat), lambda i: (i, 0)),   # packed input rows
            pl.BlockSpec((feat, h4), lambda i: (0, 0)),   # block-diag weight
            pl.BlockSpec((1, h4), lambda i: (0, 0)),      # folded biases
            pl.BlockSpec((h4, 1), lambda i: (0, 0)),      # folded head vector
            pl.BlockSpec((1, 1), lambda i: (0, 0)),       # folded output bias
        ],
        out_specs=pl.BlockSpec((tm, 1), lambda i: (i, 0)),
        compiler_params=pltpu.CompilerParams(
            dimension_semantics=("parallel",),
            vmem_limit_bytes=48 * 1024 * 1024),
    )(x, wbd, brow, vcol, bias)

    # Padded tail rows hold garbage (ReLU of folded biases etc.); slice off.
    return out[:n]


# ---------------------------------------------------------------------------
# Pure-JAX reference (eval-mode forward, unfused, f32)
# ---------------------------------------------------------------------------
def link_predictor_reference(params, x_src, t_src, x_dst, t_dst, *, weight=1.0):
    def branch(x, lin, bn):
        w, b = lin
        scale, shift = bn
        h = (x @ w + b) * scale + shift      # Linear -> eval-mode BatchNorm1d
        return jnp.maximum(h, 0.0)           # Dropout = identity (eval); ReLU

    hx_src = branch(x_src, params["x1"], params["bn_x1"])
    ht_src = branch(t_src, params["t1"], params["bn_t1"])
    h_src = (1.0 - weight) * hx_src + weight * ht_src
    hx_dst = branch(x_dst, params["x2"], params["bn_x2"])
    ht_dst = branch(t_dst, params["t2"], params["bn_t2"])
    h_dst = (1.0 - weight) * hx_dst + weight * ht_dst

    ho1 = jnp.concatenate([h_src, h_dst], axis=-1)
    ho2 = jnp.concatenate([h_dst, h_src], axis=-1)
    w1, b1 = params["o1"]
    w2, b2 = params["o2"]
    return ((ho1 @ w1 + b1) + (ho2 @ w2 + b2)) / 2.0


if __name__ == "__main__":
    # Small shapes; N chosen so the kernel exercises multiple grid steps and the
    # ragged-n / padding path (n not a multiple of the row tile).
    N, NFEAT, NTEBD, NHID = 300, 16, 8, 32
    WEIGHT = 0.7   # exercises the (1-weight)/weight fold

    key = jax.random.PRNGKey(0)
    kp, k1, k2, k3, k4 = jax.random.split(key, 5)

    params = init_params(kp, NFEAT, NTEBD, NHID)
    x_src = jax.random.normal(k1, (N, NFEAT), jnp.float32)
    t_src = jax.random.normal(k2, (N, NTEBD), jnp.float32)
    x_dst = jax.random.normal(k3, (N, NFEAT), jnp.float32)
    t_dst = jax.random.normal(k4, (N, NTEBD), jnp.float32)

    fwd = jax.jit(link_predictor_forward,
                  static_argnames=("tm", "compute_dtype"))

    ref = link_predictor_reference(params, x_src, t_src, x_dst, t_dst,
                                   weight=WEIGHT)

    # f32 path: tight structural check of the fold / tiling / padding.
    out_f32 = jax.block_until_ready(
        fwd(params, x_src, t_src, x_dst, t_dst, weight=WEIGHT,
            compute_dtype=jnp.float32))
    assert out_f32.shape == (N, 1)
    assert jnp.allclose(out_f32, ref, atol=2e-4, rtol=2e-4), "f32 mismatch"

    # Default bf16 input/weight stream (f32 accumulation): looser tolerance.
    out = jax.block_until_ready(
        fwd(params, x_src, t_src, x_dst, t_dst, weight=WEIGHT))
    assert out.shape == (N, 1)
    assert jnp.allclose(out, ref, atol=5e-2, rtol=5e-2), "bf16 mismatch"

    print("KERNEL_OK")
</pallas_src>

<mosaic_0001>
module attributes {stable_mosaic.version = 11 : i64} {
  func.func @_link_predictor_kernel(%arg0: i32, %arg1: memref<256x48xf32, #tpu.memory_space<vmem>>, %arg2: memref<48x128xf32, #tpu.memory_space<vmem>>, %arg3: memref<1x128xf32, #tpu.memory_space<vmem>>, %arg4: memref<128x1xf32, #tpu.memory_space<vmem>>, %arg5: memref<1x1xf32, #tpu.memory_space<vmem>>, %arg6: memref<256x1xf32, #tpu.memory_space<vmem>>) attributes {dimension_semantics = [#tpu.dimension_semantics<parallel>], iteration_bounds = array<i64: 2>, scalar_prefetch = 0 : i64, scratch_operands = 0 : i64, tpu.core_type = #tpu.core_type<tc>, window_params = [{transform_indices = @transform_0, window_bounds = array<i64: 256, 48>}, {pipeline_mode = #tpu.pipeline_mode<synchronous>, transform_indices = @transform_1, window_bounds = array<i64: 48, 128>}, {pipeline_mode = #tpu.pipeline_mode<synchronous>, transform_indices = @transform_2, window_bounds = array<i64: 1, 128>}, {pipeline_mode = #tpu.pipeline_mode<synchronous>, transform_indices = @transform_3, window_bounds = array<i64: 128, 1>}, {pipeline_mode = #tpu.pipeline_mode<synchronous>, transform_indices = @transform_4, window_bounds = array<i64: 1, 1>}, {transform_indices = @transform_5, window_bounds = array<i64: 256, 1>}]} {
    %c0 = arith.constant 0 : index
    %c0_0 = arith.constant 0 : index
    %0 = vector.load %arg1[%c0, %c0_0] : memref<256x48xf32, #tpu.memory_space<vmem>>, vector<256x48xf32>
    %c0_1 = arith.constant 0 : index
    %c0_2 = arith.constant 0 : index
    %1 = vector.load %arg2[%c0_1, %c0_2] : memref<48x128xf32, #tpu.memory_space<vmem>>, vector<48x128xf32>
    %cst = arith.constant dense<0.000000e+00> : vector<256x128xf32>
    %2 = tpu.matmul %0, %1, %cst {dimension_numbers = #tpu.dot_dimension_numbers<[1], [0], [0], [1], [0, 0, 1, 1], [], []>} : vector<256x48xf32>, vector<48x128xf32>, vector<256x128xf32> -> vector<256x128xf32>
    %c0_3 = arith.constant 0 : index
    %c0_4 = arith.constant 0 : index
    %3 = vector.load %arg3[%c0_3, %c0_4] : memref<1x128xf32, #tpu.memory_space<vmem>>, vector<1x128xf32>
    %4 = vector.broadcast %3 : vector<1x128xf32> to vector<256x128xf32>
    %5 = arith.addf %2, %4 : vector<256x128xf32>
    %cst_5 = arith.constant 0.000000e+00 : f32
    %6 = vector.broadcast %cst_5 : f32 to vector<256x128xf32>
    %7 = arith.maximumf %5, %6 : vector<256x128xf32>
    %c0_6 = arith.constant 0 : index
    %c0_7 = arith.constant 0 : index
    %8 = vector.load %arg4[%c0_6, %c0_7] : memref<128x1xf32, #tpu.memory_space<vmem>>, vector<128x1xf32>
    %cst_8 = arith.constant dense<0.000000e+00> : vector<256x1xf32>
    %9 = tpu.matmul %7, %8, %cst_8 {dimension_numbers = #tpu.dot_dimension_numbers<[1], [0], [0], [1], [0, 0, 1, 1], [], []>} : vector<256x128xf32>, vector<128x1xf32>, vector<256x1xf32> -> vector<256x1xf32>
    %c0_9 = arith.constant 0 : index
    %c0_10 = arith.constant 0 : index
    %10 = vector.load %arg5[%c0_9, %c0_10] : memref<1x1xf32, #tpu.memory_space<vmem>>, vector<1x1xf32>
    %11 = vector.broadcast %10 : vector<1x1xf32> to vector<256x1xf32>
    %12 = arith.addf %9, %11 : vector<256x1xf32>
    %c0_11 = arith.constant 0 : index
    %c0_12 = arith.constant 0 : index
    %13 = vector.load %arg6[%c0_11, %c0_12] : memref<256x1xf32, #tpu.memory_space<vmem>>, vector<256x1xf32>
    tpu.vector_store %arg6[%c0_11, %c0_12], %12 {strides = array<i32>} : memref<256x1xf32, #tpu.memory_space<vmem>>, vector<256x1xf32>,
    return
  }
  func.func @transform_0(%arg0: i32) -> (i32, i32) {
    %c0_i32 = arith.constant 0 : i32
    %c0_i32_0 = arith.constant 0 : i32
    return %arg0, %c0_i32 : i32, i32
  }
  func.func @transform_1(%arg0: i32) -> (i32, i32) {
    %c0_i32 = arith.constant 0 : i32
    %c0_i32_0 = arith.constant 0 : i32
    %c0_i32_1 = arith.constant 0 : i32
    return %c0_i32, %c0_i32_0 : i32, i32
  }
  func.func @transform_2(%arg0: i32) -> (i32, i32) {
    %c0_i32 = arith.constant 0 : i32
    %c0_i32_0 = arith.constant 0 : i32
    %c0_i32_1 = arith.constant 0 : i32
    return %c0_i32, %c0_i32_0 : i32, i32
  }
  func.func @transform_3(%arg0: i32) -> (i32, i32) {
    %c0_i32 = arith.constant 0 : i32
    %c0_i32_0 = arith.constant 0 : i32
    %c0_i32_1 = arith.constant 0 : i32
    return %c0_i32, %c0_i32_0 : i32, i32
  }
  func.func @transform_4(%arg0: i32) -> (i32, i32) {
    %c0_i32 = arith.constant 0 : i32
    %c0_i32_0 = arith.constant 0 : i32
    %c0_i32_1 = arith.constant 0 : i32
    return %c0_i32, %c0_i32_0 : i32, i32
  }
  func.func @transform_5(%arg0: i32) -> (i32, i32) {
    %c0_i32 = arith.constant 0 : i32
    %c0_i32_0 = arith.constant 0 : i32
    return %arg0, %c0_i32 : i32, i32
  }
}

</mosaic_0001>

<llo_original>
// kernel: link_predictor_forward.1
$region0: #{link_predictor_forward.1}
  #allocation0 [shape = 'u32[]', space=smem, size = 0x4, offset = 0x4, fixed_abs, tag = 'smem constant byte address 0x4 - core index']
  #allocation1 [shape = 'u32[144,128]{1,0:T(1,128)}', space=vmem, size = 0x12000, scoped, tag = 'internal scratch']
  #allocation2 [shape = 'f32[1,1]{1,0:T(1,128)S(1)}', space=vmem, size = 0x200, scoped, tag = 'scoped memory for link_predictor_forward.1']
  %s0 = inlined_call_operand.vmem [shape: f32[512,48], index: 0, kind: input, shape index: {}]
  %s1 = inlined_call_operand.vmem [shape: f32[48,128], index: 1, kind: input, shape index: {}]
  %s2 = inlined_call_operand.vmem [shape: f32[1,128], index: 2, kind: input, shape index: {}]
  %s3 = inlined_call_operand.vmem [shape: f32[128,1], index: 3, kind: input, shape index: {}]
  %s4 = inlined_call_operand.<no memory space> [shape: f32[1,1], index: 4, kind: input, shape index: {}]
  %s5 = inlined_call_operand.vmem [shape: f32[512,1], index: 5, kind: output, shape index: {}]
  %s6 = sld [smem:[#allocation0]]
  $region53: #{link_predictor_forward.1} parent=0
    _
  %s8 = ssub.s32 1, %s6
  %s9 = scalar_select 0, %s8, %s6
  %v10 = vstv %s4
  %11 = vst [vmem:[#allocation2] sm:$0x1] %v10
  loop: start=0, step=1, limit=4
  $region2: #{link_predictor_forward.1} parent=0 // loop_pre_header
    _
  $region3: #{link_predictor_forward.1} parent=0 // loop_header
    %s13 = sphi 0, %s17
    %p14 = scmp.ge.s32.totalorder %s13, 4
    %s23 = sphi 0, %s25
    %s26 = sphi 0, %s23
    %s27 = sphi 0, %s26
    %s43 = sphi 0, %s27
    %s47 = sphi 0, %s47
    %s49 = sphi 0, %s47
    %s50 = sphi 0, %s49
    %s64 = sphi 0, %s50
    %s68 = sphi 0, %s68
    %s70 = sphi 0, %s68
    %s71 = sphi 0, %s70
    %s85 = sphi 0, %s71
    %s89 = sphi 0, %s89
    %s91 = sphi 0, %s89
    %s92 = sphi 0, %s91
    %s106 = sphi 0, %s92
    %s110 = sphi 0, %s110
    %s112 = sphi 0, %s110
    %s113 = sphi 0, %s112
    %s127 = sphi 0, %s113
    %s133 = sphi 0, %s135
    %s136 = sphi 0, %s133
    %s137 = sphi 0, %s136
    %s153 = sphi 0, %s137
  $region4: #{link_predictor_forward.1} parent=0 // loop_header_branch
    %16 = sbr.rel (%p14) target = $region8
  $region5: #{link_predictor_forward.1} parent=0 // loop_body
    %s18 = ssub.s32 %s13, 1
    %s19 = ssub.s32 %s13, 2
    %s20 = sadd.s32 %s13, 1
    %s21 = ssub.s32 %s13, %s20
    %p22 = scmp.eq.s32.totalorder %s21, 0
    %s24 = sadd.s32 %s23, 1
    %s25 = scalar_select %p22, %s23, %s24
    %p28 = pneg %p22
    %p29 = scmp.eq.s32.totalorder %s13, 1
    %p30 = por %p28, %p29
    %p31 = scmp.ne.s32.totalorder %s23, %s26
    %p32 = scmp.eq.s32.totalorder %s13, 0
    %p33 = por %p31, %p32
    %p34 = scmp.ne.s32.totalorder %s23, %s26
    %p35 = scmp.eq.s32.totalorder %s18, 1
    %p36 = por %p34, %p35
    %p37 = scmp.ne.s32.totalorder %s26, %s27
    %p38 = scmp.eq.s32.totalorder %s18, 0
    %p39 = por %p37, %p38
    %p40 = scmp.ne.s32.totalorder %s26, %s27
    %p41 = scmp.eq.s32.totalorder %s19, 1
    %p42 = por %p40, %p41
    %p44 = scmp.ne.s32.totalorder %s27, %s43
    %p45 = scmp.eq.s32.totalorder %s19, 0
    %p46 = por %p44, %p45
    %s48 = sadd.s32 %s47, 1
    %p51 = scmp.eq.s32.totalorder %s13, 1
    %p52 = scmp.ne.s32.totalorder %s47, %s49
    %p53 = scmp.eq.s32.totalorder %s13, 0
    %p54 = por %p52, %p53
    %p55 = scmp.ne.s32.totalorder %s47, %s49
    %p56 = scmp.eq.s32.totalorder %s18, 1
    %p57 = por %p55, %p56
    %p58 = scmp.ne.s32.totalorder %s49, %s50
    %p59 = scmp.eq.s32.totalorder %s18, 0
    %p60 = por %p58, %p59
    %p61 = scmp.ne.s32.totalorder %s49, %s50
    %p62 = scmp.eq.s32.totalorder %s19, 1
    %p63 = por %p61, %p62
    %p65 = scmp.ne.s32.totalorder %s50, %s64
    %p66 = scmp.eq.s32.totalorder %s19, 0
    %p67 = por %p65, %p66
    %s69 = sadd.s32 %s68, 1
    %p72 = scmp.eq.s32.totalorder %s13, 1
    %p73 = scmp.ne.s32.totalorder %s68, %s70
    %p74 = scmp.eq.s32.totalorder %s13, 0
    %p75 = por %p73, %p74
    %p76 = scmp.ne.s32.totalorder %s68, %s70
    %p77 = scmp.eq.s32.totalorder %s18, 1
    %p78 = por %p76, %p77
    %p79 = scmp.ne.s32.totalorder %s70, %s71
    %p80 = scmp.eq.s32.totalorder %s18, 0
    %p81 = por %p79, %p80
    %p82 = scmp.ne.s32.totalorder %s70, %s71
    %p83 = scmp.eq.s32.totalorder %s19, 1
    %p84 = por %p82, %p83
    %p86 = scmp.ne.s32.totalorder %s71, %s85
    %p87 = scmp.eq.s32.totalorder %s19, 0
    %p88 = por %p86, %p87
    %s90 = sadd.s32 %s89, 1
    %p93 = scmp.eq.s32.totalorder %s13, 1
    %p94 = scmp.ne.s32.totalorder %s89, %s91
    %p95 = scmp.eq.s32.totalorder %s13, 0
    %p96 = por %p94, %p95
    %p97 = scmp.ne.s32.totalorder %s89, %s91
    %p98 = scmp.eq.s32.totalorder %s18, 1
    %p99 = por %p97, %p98
    %p100 = scmp.ne.s32.totalorder %s91, %s92
    %p101 = scmp.eq.s32.totalorder %s18, 0
    %p102 = por %p100, %p101
    %p103 = scmp.ne.s32.totalorder %s91, %s92
    %p104 = scmp.eq.s32.totalorder %s19, 1
    %p105 = por %p103, %p104
    %p107 = scmp.ne.s32.totalorder %s92, %s106
    %p108 = scmp.eq.s32.totalorder %s19, 0
    %p109 = por %p107, %p108
    %s111 = sadd.s32 %s110, 1
    %p114 = scmp.eq.s32.totalorder %s13, 1
    %p115 = scmp.ne.s32.totalorder %s110, %s112
    %p116 = scmp.eq.s32.totalorder %s13, 0
    %p117 = por %p115, %p116
    %p118 = scmp.ne.s32.totalorder %s110, %s112
    %p119 = scmp.eq.s32.totalorder %s18, 1
    %p120 = por %p118, %p119
    %p121 = scmp.ne.s32.totalorder %s112, %s113
    %p122 = scmp.eq.s32.totalorder %s18, 0
    %p123 = por %p121, %p122
    %p124 = scmp.ne.s32.totalorder %s112, %s113
    %p125 = scmp.eq.s32.totalorder %s19, 1
    %p126 = por %p124, %p125
    %p128 = scmp.ne.s32.totalorder %s113, %s127
    %p129 = scmp.eq.s32.totalorder %s19, 0
    %p130 = por %p128, %p129
    %s131 = ssub.s32 %s13, %s20
    %p132 = scmp.eq.s32.totalorder %s131, 0
    %s134 = sadd.s32 %s133, 1
    %s135 = scalar_select %p132, %s133, %s134
    %p138 = pneg %p132
    %p139 = scmp.eq.s32.totalorder %s13, 1
    %p140 = por %p138, %p139
    %p141 = scmp.ne.s32.totalorder %s133, %s136
    %p142 = scmp.eq.s32.totalorder %s13, 0
    %p143 = por %p141, %p142
    %p144 = scmp.ne.s32.totalorder %s133, %s136
    %p145 = scmp.eq.s32.totalorder %s18, 1
    %p146 = por %p144, %p145
    %p147 = scmp.ne.s32.totalorder %s136, %s137
    %p148 = scmp.eq.s32.totalorder %s18, 0
    %p149 = por %p147, %p148
    %p150 = scmp.ne.s32.totalorder %s136, %s137
    %p151 = scmp.eq.s32.totalorder %s19, 1
    %p152 = por %p150, %p151
    %p154 = scmp.ne.s32.totalorder %s137, %s153
    %p155 = scmp.eq.s32.totalorder %s19, 0
    %p156 = por %p154, %p155
    %p157 = scmp.le.s32.totalorder 1, %s13
    %p158 = scmp.lt.s32.totalorder %s13, 3
    %p159 = pnand %p157, %p158
    %p160 = pneg %p159
    // Predicated region
    $region9: #{link_predictor_forward.1} parent=5 // pred_check
      _
    $region10: #{link_predictor_forward.1} parent=5 // pred_check_branch
      %162 = sbr.rel (%p159) target = $region12
    $region11: #{link_predictor_forward.1} parent=5 // pred_region
      %s163 = ssub.s32 %s13, 1
      // Predicated region
      $region13: #{link_predictor_forward.1} parent=11 // pred_check
        %p164 = pneg %p60
      $region14: #{link_predictor_forward.1} parent=11 // pred_check_branch
        %166 = sbr.rel (%p164) target = $region16
      $region15: #{link_predictor_forward.1} parent=11 // pred_region
        _
      $region16: #{link_predictor_forward.1} parent=11 // pred_fallthru
        _
      // Predicated region
      $region17: #{link_predictor_forward.1} parent=11 // pred_check
        %p167 = pneg %p81
      $region18: #{link_predictor_forward.1} parent=11 // pred_check_branch
        %169 = sbr.rel (%p167) target = $region20
      $region19: #{link_predictor_forward.1} parent=11 // pred_region
        _
      $region20: #{link_predictor_forward.1} parent=11 // pred_fallthru
        _
      // Predicated region
      $region21: #{link_predictor_forward.1} parent=11 // pred_check
        %p170 = pneg %p102
      $region22: #{link_predictor_forward.1} parent=11 // pred_check_branch
        %172 = sbr.rel (%p170) target = $region24
      $region23: #{link_predictor_forward.1} parent=11 // pred_region
        _
      $region24: #{link_predictor_forward.1} parent=11 // pred_fallthru
        _
      // Predicated region
      $region25: #{link_predictor_forward.1} parent=11 // pred_check
        %p173 = pneg %p123
      $region26: #{link_predictor_forward.1} parent=11 // pred_check_branch
        %175 = sbr.rel (%p173) target = $region28
      $region27: #{link_predictor_forward.1} parent=11 // pred_region
        _
      $region28: #{link_predictor_forward.1} parent=11 // pred_fallthru
        _
    $region12: #{link_predictor_forward.1} parent=5 // pred_fallthru
      _
    %p176 = scmp.lt.s32.totalorder %s13, 2
    // Predicated region
    $region29: #{link_predictor_forward.1} parent=5 // pred_check
      %p177 = pneg %p176
    $region30: #{link_predictor_forward.1} parent=5 // pred_check_branch
      %179 = sbr.rel (%p177) target = $region32
    $region31: #{link_predictor_forward.1} parent=5 // pred_region
      // Predicated region
      $region33: #{link_predictor_forward.1} parent=31 // pred_check
        %p180 = pneg %p33
      $region34: #{link_predictor_forward.1} parent=31 // pred_check_branch
        %182 = sbr.rel (%p180) target = $region36
      $region35: #{link_predictor_forward.1} parent=31 // pred_region
        %s183 = smul.u32 32, %s13
        %p184 = scmp.lt.s32.totalorder %s183, 63
        %s185 = scalar_select %p184, %s183, 63
        %s186 = smul.addr %s185, 8
        %s187 = scalar_lea.vmem %s0, %s186
        %s188 = smul.u32 32, %s13
      $region36: #{link_predictor_forward.1} parent=31 // pred_fallthru
        _
    $region32: #{link_predictor_forward.1} parent=5 // pred_fallthru
      _
    %p189 = scmp.le.s32.totalorder 1, %s13
    %p190 = scmp.lt.s32.totalorder %s13, 3
    %p191 = pnand %p189, %p190
    %p192 = pneg %p191
    // Predicated region
    $region37: #{link_predictor_forward.1} parent=5 // pred_check
      _
    $region38: #{link_predictor_forward.1} parent=5 // pred_check_branch
      %194 = sbr.rel (%p191) target = $region40
    $region39: #{link_predictor_forward.1} parent=5 // pred_region
      %s195 = ssub.s32 %s13, 1
      %s196 = smul.u32 32, %s18
      %p197 = scmp.lt.s32.totalorder %s196, 63
      %s198 = scalar_select %p197, %s196, 63
      %s199 = smul.addr %s198, 8
      %s200 = scalar_lea.vmem %s0, %s199
      %p201 = pneg %p39
      %p202 = pneg %p36
      %p203 = pneg %p60
      %p204 = pneg %p57
      %p205 = pneg %p81
      %p206 = pneg %p78
      %p207 = pneg %p102
      %p208 = pneg %p99
      %p209 = pneg %p123
      %p210 = pneg %p120
      %p211 = pneg %p149
      %p212 = pneg %p146
      %s213 = smul.u32 32, %s18
      %p214 = scmp.lt.s32.totalorder %s213, 63
      %s215 = scalar_select %p214, %s213, 63
      %s216 = smul.addr %s215, 8
      %s217 = scalar_lea.vmem %s5, %s216
      %s218 = smul.u32 32, %s18
      %p219 = scmp.lt.s32.totalorder %s218, 63
      %s220 = scalar_select %p219, %s218, 63
      %s221 = smul.addr %s220, 8
      %s222 = scalar_lea.vmem %s0, %s221
      %s223 = smul.u32 32, %s18
      %s224 = smul.u32 32, %s18
      %p225 = scmp.lt.s32.totalorder %s224, 63
      %s226 = scalar_select %p225, %s224, 63
      %s227 = smul.addr %s226, 8
      %s228 = scalar_lea.vmem %s5, %s227
      %s229 = smul.u32 32, %s18
      %v230 = vld [vmem:[%s222] sm:$0xff]
      %v231 = vld [vmem:[%s222 + $0x8] sm:$0xff]
      %v232 = vld [vmem:[%s222 + $0x10] sm:$0xff]
      %v233 = vld [vmem:[%s222 + $0x18] sm:$0xff]
      %v234 = vld [vmem:[%s222 + $0x20] sm:$0xff]
      %v235 = vld [vmem:[%s222 + $0x28] sm:$0xff]
      %v236 = vld [vmem:[%s222 + $0x30] sm:$0xff]
      %v237 = vld [vmem:[%s222 + $0x38] sm:$0xff]
      %v238 = vld [vmem:[%s222 + $0x40] sm:$0xff]
      %v239 = vld [vmem:[%s222 + $0x48] sm:$0xff]
      %v240 = vld [vmem:[%s222 + $0x50] sm:$0xff]
      %v241 = vld [vmem:[%s222 + $0x58] sm:$0xff]
      %v242 = vld [vmem:[%s222 + $0x60] sm:$0xff]
      %v243 = vld [vmem:[%s222 + $0x68] sm:$0xff]
      %v244 = vld [vmem:[%s222 + $0x70] sm:$0xff]
      %v245 = vld [vmem:[%s222 + $0x78] sm:$0xff]
      %v246 = vld [vmem:[%s222 + $0x80] sm:$0xff]
      %v247 = vld [vmem:[%s222 + $0x88] sm:$0xff]
      %v248 = vld [vmem:[%s222 + $0x90] sm:$0xff]
      %v249 = vld [vmem:[%s222 + $0x98] sm:$0xff]
      %v250 = vld [vmem:[%s222 + $0xa0] sm:$0xff]
      %v251 = vld [vmem:[%s222 + $0xa8] sm:$0xff]
      %v252 = vld [vmem:[%s222 + $0xb0] sm:$0xff]
      %v253 = vld [vmem:[%s222 + $0xb8] sm:$0xff]
      %v254 = vld [vmem:[%s222 + $0xc0] sm:$0xff]
      %v255 = vld [vmem:[%s222 + $0xc8] sm:$0xff]
      %v256 = vld [vmem:[%s222 + $0xd0] sm:$0xff]
      %v257 = vld [vmem:[%s222 + $0xd8] sm:$0xff]
      %v258 = vld [vmem:[%s222 + $0xe0] sm:$0xff]
      %v259 = vld [vmem:[%s222 + $0xe8] sm:$0xff]
      %v260 = vld [vmem:[%s222 + $0xf0] sm:$0xff]
      %v261 = vld [vmem:[%s222 + $0xf8] sm:$0xff]
      %v262 = vld [vmem:[%s1] sm:$0xff]
      %v263 = vld [vmem:[%s1 + $0x8] sm:$0xff]
      %v264 = vld [vmem:[%s1 + $0x10] sm:$0xff]
      %v265 = vld [vmem:[%s1 + $0x18] sm:$0xff]
      %v266 = vld [vmem:[%s1 + $0x20] sm:$0xff]
      %v267 = vld [vmem:[%s1 + $0x28] sm:$0xff]
      %v268 = vld [vmem:[%s2] sm:$0x1]
      %v270 = vlaneseq
      %v271 = vshrl.u32 %v270, 7
      %v272 = vsub.s32 0, %v271
      %v273 = vrot.slane %v268, %v272
      %vm275 = vcmask 392192
      %v277 = vsel %vm275, %v230, 0
      %v280 = vsel %vm275, %v231, 0
      %v283 = vsel %vm275, %v232, 0
      %v286 = vsel %vm275, %v233, 0
      %v289 = vsel %vm275, %v234, 0
      %v292 = vsel %vm275, %v235, 0
      %v295 = vsel %vm275, %v236, 0
      %v298 = vsel %vm275, %v237, 0
      %v301 = vsel %vm275, %v238, 0
      %v304 = vsel %vm275, %v239, 0
      %v307 = vsel %vm275, %v240, 0
      %v310 = vsel %vm275, %v241, 0
      %v313 = vsel %vm275, %v242, 0
      %v316 = vsel %vm275, %v243, 0
      %v319 = vsel %vm275, %v244, 0
      %v322 = vsel %vm275, %v245, 0
      %v325 = vsel %vm275, %v246, 0
      %v328 = vsel %vm275, %v247, 0
      %v331 = vsel %vm275, %v248, 0
      %v334 = vsel %vm275, %v249, 0
      %v337 = vsel %vm275, %v250, 0
      %v340 = vsel %vm275, %v251, 0
      %v343 = vsel %vm275, %v252, 0
      %v346 = vsel %vm275, %v253, 0
      %v349 = vsel %vm275, %v254, 0
      %v352 = vsel %vm275, %v255, 0
      %v355 = vsel %vm275, %v256, 0
      %v358 = vsel %vm275, %v257, 0
      %v361 = vsel %vm275, %v258, 0
      %v364 = vsel %vm275, %v259, 0
      %v367 = vsel %vm275, %v260, 0
      %v370 = vsel %vm275, %v261, 0
      %372 = vmatprep.subr.mxu0 0.0
      %373 = vmatpush1.msra.mxu0 %v262
      %374 = vmatprep.subr.mxu0 0.0
      %375 = vmatpush1.msra.mxu0 %v263
      %376 = vmatprep.subr.mxu0 0.0
      %377 = vmatpush1.msra.mxu0 %v264
      %378 = vmatprep.subr.mxu0 0.0
      %379 = vmatpush1.msra.mxu0 %v265
      %380 = vmatprep.subr.mxu0 0.0
      %381 = vmatpush1.msra.mxu0 %v266
      %382 = vmatprep.subr.mxu0 0.0
      %383 = vmatpush1.msra.mxu0 %v267
      %384 = vmatprep.subr.mxu0 0.0
      %385 = vmatpush1.msra.mxu0 0.0
      %386 = vmatprep.subr.mxu0 0.0
      %387 = vmatpush1.msra.mxu0 0.0
      %388 = vmatprep.subr.mxu0 0.0
      %389 = vmatpush1.msra.mxu0 0.0
      %390 = vmatprep.subr.mxu0 0.0
      %391 = vmatpush1.msra.mxu0 0.0
      %392 = vmatprep.subr.mxu0 0.0
      %393 = vmatpush1.msra.mxu0 0.0
      %394 = vmatprep.subr.mxu0 0.0
      %395 = vmatpush1.msra.mxu0 0.0
      %396 = vmatprep.subr.mxu0 0.0
      %397 = vmatpush1.msra.mxu0 0.0
      %398 = vmatprep.subr.mxu0 0.0
      %399 = vmatpush1.msra.mxu0 0.0
      %400 = vmatprep.subr.mxu0 0.0
      %401 = vmatpush1.msra.mxu0 0.0
      %402 = vmatprep.subr.mxu0 0.0
      %403 = vmatpush1.msra.mxu0 0.0
      %404 = vmatprep.subr.mxu0 0.0
      %405 = vmatpush1.msra.mxu0 0.0
      %406 = vmatprep.subr.mxu0 0.0
      %407 = vmatpush1.msra.mxu0 0.0
      %408 = vmatprep.subr.mxu0 0.0
      %409 = vmatpush1.msra.mxu0 0.0
      %410 = vmatprep.subr.mxu0 0.0
      %411 = vmatpush1.msra.mxu0 0.0
      %412 = vmatprep.subr.mxu0 0.0
      %413 = vmatpush1.msra.mxu0 0.0
      %414 = vmatprep.subr.mxu0 0.0
      %415 = vmatpush1.msra.mxu0 0.0
      %416 = vmatprep.subr.mxu0 0.0
      %417 = vmatpush1.msra.mxu0 0.0
      %418 = vmatprep.subr.mxu0 0.0
      %419 = vmatpush1.msra.mxu0 0.0
      %420 = vmatprep.subr.mxu0 0.0
      %421 = vmatpush1.msra.mxu0 0.0
      %422 = vmatprep.subr.mxu0 0.0
      %423 = vmatpush1.msra.mxu0 0.0
      %424 = vmatprep.subr.mxu0 0.0
      %425 = vmatpush1.msra.mxu0 0.0
      %426 = vmatprep.subr.mxu0 0.0
      %427 = vmatpush1.msra.mxu0 0.0
      %428 = vmatprep.subr.mxu0 0.0
      %429 = vmatpush1.msra.mxu0 0.0
      %430 = vmatprep.subr.mxu0 0.0
      %431 = vmatpush1.msra.mxu0 0.0
      %432 = vmatprep.subr.mxu0 0.0
      %433 = vmatpush1.msra.mxu0 0.0
      %434 = vmatprep.subr.mxu0 0.0
      %435 = vmatpush1.msra.mxu0 0.0
      %436 = vmatprep.mubr.f32.mxu0 0.0
      %437 = vmatmul.mubr.f32.gmra.mrb[0].mxu0 %v277
      %v438 = vpop.f32.mrb[0].mxu0
      %v439 = vadd.f32 %v273, %v438
      %v440 = vpop.f32.mrb[0].mxu0
      %441 = vmatprep.mubr.f32.mxu0 0.0
      %442 = vmatmul.mubr.f32.gmra.mrb[0].mxu0 %v280
      %v443 = vpop.f32.mrb[0].mxu0
      %v444 = vadd.f32 %v273, %v443
      %v445 = vpop.f32.mrb[0].mxu0
      %446 = vmatprep.mubr.f32.mxu0 0.0
      %447 = vmatmul.mubr.f32.gmra.mrb[0].mxu0 %v283
      %v448 = vpop.f32.mrb[0].mxu0
      %v449 = vadd.f32 %v273, %v448
      %v450 = vpop.f32.mrb[0].mxu0
      %451 = vmatprep.mubr.f32.mxu0 0.0
      %452 = vmatmul.mubr.f32.gmra.mrb[0].mxu0 %v286
      %v453 = vpop.f32.mrb[0].mxu0
      %v454 = vadd.f32 %v273, %v453
      %v455 = vpop.f32.mrb[0].mxu0
      %456 = vmatprep.mubr.f32.mxu0 0.0
      %457 = vmatmul.mubr.f32.gmra.mrb[0].mxu0 %v289
      %v458 = vpop.f32.mrb[0].mxu0
      %v459 = vadd.f32 %v273, %v458
      %v460 = vpop.f32.mrb[0].mxu0
      %461 = vmatprep.mubr.f32.mxu0 0.0
      %462 = vmatmul.mubr.f32.gmra.mrb[0].mxu0 %v292
      %v463 = vpop.f32.mrb[0].mxu0
      %v464 = vadd.f32 %v273, %v463
      %v465 = vpop.f32.mrb[0].mxu0
      %466 = vmatprep.mubr.f32.mxu0 0.0
      %467 = vmatmul.mubr.f32.gmra.mrb[0].mxu0 %v295
      %v468 = vpop.f32.mrb[0].mxu0
      %v469 = vadd.f32 %v273, %v468
      %v470 = vpop.f32.mrb[0].mxu0
      %471 = vmatprep.mubr.f32.mxu0 0.0
      %472 = vmatmul.mubr.f32.gmra.mrb[0].mxu0 %v298
      %v473 = vpop.f32.mrb[0].mxu0
      %v474 = vadd.f32 %v273, %v473
      %v475 = vpop.f32.mrb[0].mxu0
      %476 = vmatprep.mubr.f32.mxu0 0.0
      %477 = vmatmul.mubr.f32.gmra.mrb[0].mxu0 %v301
      %v478 = vpop.f32.mrb[0].mxu0
      %v479 = vadd.f32 %v273, %v478
      %v480 = vpop.f32.mrb[0].mxu0
      %481 = vmatprep.mubr.f32.mxu0 0.0
      %482 = vmatmul.mubr.f32.gmra.mrb[0].mxu0 %v304
      %v483 = vpop.f32.mrb[0].mxu0
      %v484 = vadd.f32 %v273, %v483
      %v485 = vpop.f32.mrb[0].mxu0
      %486 = vmatprep.mubr.f32.mxu0 0.0
      %487 = vmatmul.mubr.f32.gmra.mrb[0].mxu0 %v307
      %v488 = vpop.f32.mrb[0].mxu0
      %v489 = vadd.f32 %v273, %v488
      %v490 = vpop.f32.mrb[0].mxu0
      %491 = vmatprep.mubr.f32.mxu0 0.0
      %492 = vmatmul.mubr.f32.gmra.mrb[0].mxu0 %v310
      %v493 = vpop.f32.mrb[0].mxu0
      %v494 = vadd.f32 %v273, %v493
      %v495 = vpop.f32.mrb[0].mxu0
      %496 = vmatprep.mubr.f32.mxu0 0.0
      %497 = vmatmul.mubr.f32.gmra.mrb[0].mxu0 %v313
      %v498 = vpop.f32.mrb[0].mxu0
      %v499 = vadd.f32 %v273, %v498
      %v500 = vpop.f32.mrb[0].mxu0
      %501 = vmatprep.mubr.f32.mxu0 0.0
      %502 = vmatmul.mubr.f32.gmra.mrb[0].mxu0 %v316
      %v503 = vpop.f32.mrb[0].mxu0
      %v504 = vadd.f32 %v273, %v503
      %v505 = vpop.f32.mrb[0].mxu0
      %506 = vmatprep.mubr.f32.mxu0 0.0
      %507 = vmatmul.mubr.f32.gmra.mrb[0].mxu0 %v319
      %v508 = vpop.f32.mrb[0].mxu0
      %v509 = vadd.f32 %v273, %v508
      %v510 = vpop.f32.mrb[0].mxu0
      %511 = vmatprep.mubr.f32.mxu0 0.0
      %512 = vmatmul.mubr.f32.gmra.mrb[0].mxu0 %v322
      %v513 = vpop.f32.mrb[0].mxu0
      %v514 = vadd.f32 %v273, %v513
      %v515 = vpop.f32.mrb[0].mxu0
      %516 = vmatprep.mubr.f32.mxu0 0.0
      %517 = vmatmul.mubr.f32.gmra.mrb[0].mxu0 %v325
      %v518 = vpop.f32.mrb[0].mxu0
      %v519 = vadd.f32 %v273, %v518
      %v520 = vpop.f32.mrb[0].mxu0
      %521 = vmatprep.mubr.f32.mxu0 0.0
      %522 = vmatmul.mubr.f32.gmra.mrb[0].mxu0 %v328
      %v523 = vpop.f32.mrb[0].mxu0
      %v524 = vadd.f32 %v273, %v523
      %v525 = vpop.f32.mrb[0].mxu0
      %526 = vmatprep.mubr.f32.mxu0 0.0
      %527 = vmatmul.mubr.f32.gmra.mrb[0].mxu0 %v331
      %v528 = vpop.f32.mrb[0].mxu0
      %v529 = vadd.f32 %v273, %v528
      %v530 = vpop.f32.mrb[0].mxu0
      %531 = vmatprep.mubr.f32.mxu0 0.0
      %532 = vmatmul.mubr.f32.gmra.mrb[0].mxu0 %v334
      %v533 = vpop.f32.mrb[0].mxu0
      %v534 = vadd.f32 %v273, %v533
      %v535 = vpop.f32.mrb[0].mxu0
      %536 = vmatprep.mubr.f32.mxu0 0.0
      %537 = vmatmul.mubr.f32.gmra.mrb[0].mxu0 %v337
      %v538 = vpop.f32.mrb[0].mxu0
      %v539 = vadd.f32 %v273, %v538
      %v540 = vpop.f32.mrb[0].mxu0
      %541 = vmatprep.mubr.f32.mxu0 0.0
      %542 = vmatmul.mubr.f32.gmra.mrb[0].mxu0 %v340
      %v543 = vpop.f32.mrb[0].mxu0
      %v544 = vadd.f32 %v273, %v543
      %v545 = vpop.f32.mrb[0].mxu0
      %546 = vmatprep.mubr.f32.mxu0 0.0
      %547 = vmatmul.mubr.f32.gmra.mrb[0].mxu0 %v343
      %v548 = vpop.f32.mrb[0].mxu0
      %v549 = vadd.f32 %v273, %v548
      %v550 = vpop.f32.mrb[0].mxu0
      %551 = vmatprep.mubr.f32.mxu0 0.0
      %552 = vmatmul.mubr.f32.gmra.mrb[0].mxu0 %v346
      %v553 = vpop.f32.mrb[0].mxu0
      %v554 = vadd.f32 %v273, %v553
      %v555 = vpop.f32.mrb[0].mxu0
      %556 = vmatprep.mubr.f32.mxu0 0.0
      %557 = vmatmul.mubr.f32.gmra.mrb[0].mxu0 %v349
      %v558 = vpop.f32.mrb[0].mxu0
      %v559 = vadd.f32 %v273, %v558
      %v560 = vpop.f32.mrb[0].mxu0
      %561 = vmatprep.mubr.f32.mxu0 0.0
      %562 = vmatmul.mubr.f32.gmra.mrb[0].mxu0 %v352
      %v563 = vpop.f32.mrb[0].mxu0
      %v564 = vadd.f32 %v273, %v563
      %v565 = vpop.f32.mrb[0].mxu0
      %566 = vmatprep.mubr.f32.mxu0 0.0
      %567 = vmatmul.mubr.f32.gmra.mrb[0].mxu0 %v355
      %v568 = vpop.f32.mrb[0].mxu0
      %v569 = vadd.f32 %v273, %v568
      %v570 = vpop.f32.mrb[0].mxu0
      %571 = vmatprep.mubr.f32.mxu0 0.0
      %572 = vmatmul.mubr.f32.gmra.mrb[0].mxu0 %v358
      %v573 = vpop.f32.mrb[0].mxu0
      %v574 = vadd.f32 %v273, %v573
      %v575 = vpop.f32.mrb[0].mxu0
      %576 = vmatprep.mubr.f32.mxu0 0.0
      %577 = vmatmul.mubr.f32.gmra.mrb[0].mxu0 %v361
      %v578 = vpop.f32.mrb[0].mxu0
      %v579 = vadd.f32 %v273, %v578
      %v580 = vpop.f32.mrb[0].mxu0
      %581 = vmatprep.mubr.f32.mxu0 0.0
      %582 = vmatmul.mubr.f32.gmra.mrb[0].mxu0 %v364
      %v583 = vpop.f32.mrb[0].mxu0
      %v584 = vadd.f32 %v273, %v583
      %v585 = vpop.f32.mrb[0].mxu0
      %586 = vmatprep.mubr.f32.mxu0 0.0
      %587 = vmatmul.mubr.f32.gmra.mrb[0].mxu0 %v367
      %v588 = vpop.f32.mrb[0].mxu0
      %v589 = vadd.f32 %v273, %v588
      %v590 = vpop.f32.mrb[0].mxu0
      %591 = vmatprep.mubr.f32.mxu0 0.0
      %592 = vmatmul.mubr.f32.gmra.mrb[0].mxu0 %v370
      %v593 = vpop.f32.mrb[0].mxu0
      %v594 = vadd.f32 %v273, %v593
      %v595 = vpop.f32.mrb[0].mxu0
      %596 = vdwg.mxu0
      %v597 = vmax.f32 %v439, 0.0
      %v598 = vmax.f32 %v444, 0.0
      %v599 = vmax.f32 %v449, 0.0
      %v600 = vmax.f32 %v454, 0.0
      %v601 = vmax.f32 %v459, 0.0
      %v602 = vmax.f32 %v464, 0.0
      %v603 = vmax.f32 %v469, 0.0
      %v604 = vmax.f32 %v474, 0.0
      %v605 = vmax.f32 %v479, 0.0
      %v606 = vmax.f32 %v484, 0.0
      %v607 = vmax.f32 %v489, 0.0
      %v608 = vmax.f32 %v494, 0.0
      %v609 = vmax.f32 %v499, 0.0
      %v610 = vmax.f32 %v504, 0.0
      %v611 = vmax.f32 %v509, 0.0
      %v612 = vmax.f32 %v514, 0.0
      %v613 = vmax.f32 %v519, 0.0
      %v614 = vmax.f32 %v524, 0.0
      %v615 = vmax.f32 %v529, 0.0
      %v616 = vmax.f32 %v534, 0.0
      %v617 = vmax.f32 %v539, 0.0
      %v618 = vmax.f32 %v544, 0.0
      %v619 = vmax.f32 %v549, 0.0
      %v620 = vmax.f32 %v554, 0.0
      %v621 = vmax.f32 %v559, 0.0
      %v622 = vmax.f32 %v564, 0.0
      %v623 = vmax.f32 %v569, 0.0
      %v624 = vmax.f32 %v574, 0.0
      %v625 = vmax.f32 %v579, 0.0
      %v626 = vmax.f32 %v584, 0.0
      %v627 = vmax.f32 %v589, 0.0
      %v628 = vmax.f32 %v594, 0.0
      %v629 = vld [vmem:[%s3] sm:$0xff]
      %v630 = vld [vmem:[%s3 + $0x8] sm:$0xff]
      %v631 = vld [vmem:[%s3 + $0x10] sm:$0xff]
      %v632 = vld [vmem:[%s3 + $0x18] sm:$0xff]
      %v633 = vld [vmem:[%s3 + $0x20] sm:$0xff]
      %v634 = vld [vmem:[%s3 + $0x28] sm:$0xff]
      %v635 = vld [vmem:[%s3 + $0x30] sm:$0xff]
      %v636 = vld [vmem:[%s3 + $0x38] sm:$0xff]
      %v637 = vld [vmem:[%s3 + $0x40] sm:$0xff]
      %v638 = vld [vmem:[%s3 + $0x48] sm:$0xff]
      %v639 = vld [vmem:[%s3 + $0x50] sm:$0xff]
      %v640 = vld [vmem:[%s3 + $0x58] sm:$0xff]
      %v641 = vld [vmem:[%s3 + $0x60] sm:$0xff]
      %v642 = vld [vmem:[%s3 + $0x68] sm:$0xff]
      %v643 = vld [vmem:[%s3 + $0x70] sm:$0xff]
      %v644 = vld [vmem:[%s3 + $0x78] sm:$0xff]
      %v645 = vld [vmem:[#allocation2] sm:$0x1]
      %v647 = vlaneseq
      %v648 = vshrl.u32 %v647, 7
      %v649 = vsub.s32 0, %v648
      %v650 = vrot.slane %v645, %v649
      %652 = vmatprep.subr.mxu0 0.0
      %653 = vmatpush1.msra.mxu0 %v629
      %654 = vmatprep.subr.mxu0 0.0
      %655 = vmatpush1.msra.mxu0 %v630
      %656 = vmatprep.subr.mxu0 0.0
      %657 = vmatpush1.msra.mxu0 %v631
      %658 = vmatprep.subr.mxu0 0.0
      %659 = vmatpush1.msra.mxu0 %v632
      %660 = vmatprep.subr.mxu0 0.0
      %661 = vmatpush1.msra.mxu0 %v633
      %662 = vmatprep.subr.mxu0 0.0
      %663 = vmatpush1.msra.mxu0 %v634
      %664 = vmatprep.subr.mxu0 0.0
      %665 = vmatpush1.msra.mxu0 %v635
      %666 = vmatprep.subr.mxu0 0.0
      %667 = vmatpush1.msra.mxu0 %v636
      %668 = vmatprep.subr.mxu0 0.0
      %669 = vmatpush1.msra.mxu0 %v637
      %670 = vmatprep.subr.mxu0 0.0
      %671 = vmatpush1.msra.mxu0 %v638
      %672 = vmatprep.subr.mxu0 0.0
      %673 = vmatpush1.msra.mxu0 %v639
      %674 = vmatprep.subr.mxu0 0.0
      %675 = vmatpush1.msra.mxu0 %v640
      %676 = vmatprep.subr.mxu0 0.0
      %677 = vmatpush1.msra.mxu0 %v641
      %678 = vmatprep.subr.mxu0 0.0
      %679 = vmatpush1.msra.mxu0 %v642
      %680 = vmatprep.subr.mxu0 0.0
      %681 = vmatpush1.msra.mxu0 %v643
      %682 = vmatprep.subr.mxu0 0.0
      %683 = vmatpush1.msra.mxu0 %v644
      %684 = vmatprep.subr.mxu0 0.0
      %685 = vmatpush1.msra.mxu0 0.0
      %686 = vmatprep.subr.mxu0 0.0
      %687 = vmatpush1.msra.mxu0 0.0
      %688 = vmatprep.subr.mxu0 0.0
      %689 = vmatpush1.msra.mxu0 0.0
      %690 = vmatprep.subr.mxu0 0.0
      %691 = vmatpush1.msra.mxu0 0.0
      %692 = vmatprep.subr.mxu0 0.0
      %693 = vmatpush1.msra.mxu0 0.0
      %694 = vmatprep.subr.mxu0 0.0
      %695 = vmatpush1.msra.mxu0 0.0
      %696 = vmatprep.subr.mxu0 0.0
      %697 = vmatpush1.msra.mxu0 0.0
      %698 = vmatprep.subr.mxu0 0.0
      %699 = vmatpush1.msra.mxu0 0.0
      %700 = vmatprep.subr.mxu0 0.0
      %701 = vmatpush1.msra.mxu0 0.0
      %702 = vmatprep.subr.mxu0 0.0
      %703 = vmatpush1.msra.mxu0 0.0
      %704 = vmatprep.subr.mxu0 0.0
      %705 = vmatpush1.msra.mxu0 0.0
      %706 = vmatprep.subr.mxu0 0.0
      %707 = vmatpush1.msra.mxu0 0.0
      %708 = vmatprep.subr.mxu0 0.0
      %709 = vmatpush1.msra.mxu0 0.0
      %710 = vmatprep.subr.mxu0 0.0
      %711 = vmatpush1.msra.mxu0 0.0
      %712 = vmatprep.subr.mxu0 0.0
      %713 = vmatpush1.msra.mxu0 0.0
      %714 = vmatprep.subr.mxu0 0.0
      %715 = vmatpush1.msra.mxu0 0.0
      %716 = vmatprep.mubr.f32.mxu0 0.0
      %717 = vmatmul.mubr.f32.gmra.mrb[0].mxu0 %v597
      %v718 = vpop.f32.mrb[0].mxu0
      %v719 = vadd.f32 %v650, %v718
      %v720 = vpop.f32.mrb[0].mxu0
      %721 = vmatprep.mubr.f32.mxu0 0.0
      %722 = vmatmul.mubr.f32.gmra.mrb[0].mxu0 %v598
      %v723 = vpop.f32.mrb[0].mxu0
      %v724 = vadd.f32 %v650, %v723
      %v725 = vpop.f32.mrb[0].mxu0
      %726 = vmatprep.mubr.f32.mxu0 0.0
      %727 = vmatmul.mubr.f32.gmra.mrb[0].mxu0 %v599
      %v728 = vpop.f32.mrb[0].mxu0
      %v729 = vadd.f32 %v650, %v728
      %v730 = vpop.f32.mrb[0].mxu0
      %731 = vmatprep.mubr.f32.mxu0 0.0
      %732 = vmatmul.mubr.f32.gmra.mrb[0].mxu0 %v600
      %v733 = vpop.f32.mrb[0].mxu0
      %v734 = vadd.f32 %v650, %v733
      %v735 = vpop.f32.mrb[0].mxu0
      %736 = vmatprep.mubr.f32.mxu0 0.0
      %737 = vmatmul.mubr.f32.gmra.mrb[0].mxu0 %v601
      %v738 = vpop.f32.mrb[0].mxu0
      %v739 = vadd.f32 %v650, %v738
      %v740 = vpop.f32.mrb[0].mxu0
      %741 = vmatprep.mubr.f32.mxu0 0.0
      %742 = vmatmul.mubr.f32.gmra.mrb[0].mxu0 %v602
      %v743 = vpop.f32.mrb[0].mxu0
      %v744 = vadd.f32 %v650, %v743
      %v745 = vpop.f32.mrb[0].mxu0
      %746 = vmatprep.mubr.f32.mxu0 0.0
      %747 = vmatmul.mubr.f32.gmra.mrb[0].mxu0 %v603
      %v748 = vpop.f32.mrb[0].mxu0
      %v749 = vadd.f32 %v650, %v748
      %v750 = vpop.f32.mrb[0].mxu0
      %751 = vmatprep.mubr.f32.mxu0 0.0
      %752 = vmatmul.mubr.f32.gmra.mrb[0].mxu0 %v604
      %v753 = vpop.f32.mrb[0].mxu0
      %v754 = vadd.f32 %v650, %v753
      %v755 = vpop.f32.mrb[0].mxu0
      %756 = vmatprep.mubr.f32.mxu0 0.0
      %757 = vmatmul.mubr.f32.gmra.mrb[0].mxu0 %v605
      %v758 = vpop.f32.mrb[0].mxu0
      %v759 = vadd.f32 %v650, %v758
      %v760 = vpop.f32.mrb[0].mxu0
      %761 = vmatprep.mubr.f32.mxu0 0.0
      %762 = vmatmul.mubr.f32.gmra.mrb[0].mxu0 %v606
      %v763 = vpop.f32.mrb[0].mxu0
      %v764 = vadd.f32 %v650, %v763
      %v765 = vpop.f32.mrb[0].mxu0
      %766 = vmatprep.mubr.f32.mxu0 0.0
      %767 = vmatmul.mubr.f32.gmra.mrb[0].mxu0 %v607
      %v768 = vpop.f32.mrb[0].mxu0
      %v769 = vadd.f32 %v650, %v768
      %v770 = vpop.f32.mrb[0].mxu0
      %771 = vmatprep.mubr.f32.mxu0 0.0
      %772 = vmatmul.mubr.f32.gmra.mrb[0].mxu0 %v608
      %v773 = vpop.f32.mrb[0].mxu0
      %v774 = vadd.f32 %v650, %v773
      %v775 = vpop.f32.mrb[0].mxu0
      %776 = vmatprep.mubr.f32.mxu0 0.0
      %777 = vmatmul.mubr.f32.gmra.mrb[0].mxu0 %v609
      %v778 = vpop.f32.mrb[0].mxu0
      %v779 = vadd.f32 %v650, %v778
      %v780 = vpop.f32.mrb[0].mxu0
      %781 = vmatprep.mubr.f32.mxu0 0.0
      %782 = vmatmul.mubr.f32.gmra.mrb[0].mxu0 %v610
      %v783 = vpop.f32.mrb[0].mxu0
      %v784 = vadd.f32 %v650, %v783
      %v785 = vpop.f32.mrb[0].mxu0
      %786 = vmatprep.mubr.f32.mxu0 0.0
      %787 = vmatmul.mubr.f32.gmra.mrb[0].mxu0 %v611
      %v788 = vpop.f32.mrb[0].mxu0
      %v789 = vadd.f32 %v650, %v788
      %v790 = vpop.f32.mrb[0].mxu0
      %791 = vmatprep.mubr.f32.mxu0 0.0
      %792 = vmatmul.mubr.f32.gmra.mrb[0].mxu0 %v612
      %v793 = vpop.f32.mrb[0].mxu0
      %v794 = vadd.f32 %v650, %v793
      %v795 = vpop.f32.mrb[0].mxu0
      %796 = vmatprep.mubr.f32.mxu0 0.0
      %797 = vmatmul.mubr.f32.gmra.mrb[0].mxu0 %v613
      %v798 = vpop.f32.mrb[0].mxu0
      %v799 = vadd.f32 %v650, %v798
      %v800 = vpop.f32.mrb[0].mxu0
      %801 = vmatprep.mubr.f32.mxu0 0.0
      %802 = vmatmul.mubr.f32.gmra.mrb[0].mxu0 %v614
      %v803 = vpop.f32.mrb[0].mxu0
      %v804 = vadd.f32 %v650, %v803
      %v805 = vpop.f32.mrb[0].mxu0
      %806 = vmatprep.mubr.f32.mxu0 0.0
      %807 = vmatmul.mubr.f32.gmra.mrb[0].mxu0 %v615
      %v808 = vpop.f32.mrb[0].mxu0
      %v809 = vadd.f32 %v650, %v808
      %v810 = vpop.f32.mrb[0].mxu0
      %811 = vmatprep.mubr.f32.mxu0 0.0
      %812 = vmatmul.mubr.f32.gmra.mrb[0].mxu0 %v616
      %v813 = vpop.f32.mrb[0].mxu0
      %v814 = vadd.f32 %v650, %v813
      %v815 = vpop.f32.mrb[0].mxu0
      %816 = vmatprep.mubr.f32.mxu0 0.0
      %817 = vmatmul.mubr.f32.gmra.mrb[0].mxu0 %v617
      %v818 = vpop.f32.mrb[0].mxu0
      %v819 = vadd.f32 %v650, %v818
      %v820 = vpop.f32.mrb[0].mxu0
      %821 = vmatprep.mubr.f32.mxu0 0.0
      %822 = vmatmul.mubr.f32.gmra.mrb[0].mxu0 %v618
      %v823 = vpop.f32.mrb[0].mxu0
      %v824 = vadd.f32 %v650, %v823
      %v825 = vpop.f32.mrb[0].mxu0
      %826 = vmatprep.mubr.f32.mxu0 0.0
      %827 = vmatmul.mubr.f32.gmra.mrb[0].mxu0 %v619
      %v828 = vpop.f32.mrb[0].mxu0
      %v829 = vadd.f32 %v650, %v828
      %v830 = vpop.f32.mrb[0].mxu0
      %831 = vmatprep.mubr.f32.mxu0 0.0
      %832 = vmatmul.mubr.f32.gmra.mrb[0].mxu0 %v620
      %v833 = vpop.f32.mrb[0].mxu0
      %v834 = vadd.f32 %v650, %v833
      %v835 = vpop.f32.mrb[0].mxu0
      %836 = vmatprep.mubr.f32.mxu0 0.0
      %837 = vmatmul.mubr.f32.gmra.mrb[0].mxu0 %v621
      %v838 = vpop.f32.mrb[0].mxu0
      %v839 = vadd.f32 %v650, %v838
      %v840 = vpop.f32.mrb[0].mxu0
      %841 = vmatprep.mubr.f32.mxu0 0.0
      %842 = vmatmul.mubr.f32.gmra.mrb[0].mxu0 %v622
      %v843 = vpop.f32.mrb[0].mxu0
      %v844 = vadd.f32 %v650, %v843
      %v845 = vpop.f32.mrb[0].mxu0
      %846 = vmatprep.mubr.f32.mxu0 0.0
      %847 = vmatmul.mubr.f32.gmra.mrb[0].mxu0 %v623
      %v848 = vpop.f32.mrb[0].mxu0
      %v849 = vadd.f32 %v650, %v848
      %v850 = vpop.f32.mrb[0].mxu0
      %851 = vmatprep.mubr.f32.mxu0 0.0
      %852 = vmatmul.mubr.f32.gmra.mrb[0].mxu0 %v624
      %v853 = vpop.f32.mrb[0].mxu0
      %v854 = vadd.f32 %v650, %v853
      %v855 = vpop.f32.mrb[0].mxu0
      %856 = vmatprep.mubr.f32.mxu0 0.0
      %857 = vmatmul.mubr.f32.gmra.mrb[0].mxu0 %v625
      %v858 = vpop.f32.mrb[0].mxu0
      %v859 = vadd.f32 %v650, %v858
      %v860 = vpop.f32.mrb[0].mxu0
      %861 = vmatprep.mubr.f32.mxu0 0.0
      %862 = vmatmul.mubr.f32.gmra.mrb[0].mxu0 %v626
      %v863 = vpop.f32.mrb[0].mxu0
      %v864 = vadd.f32 %v650, %v863
      %v865 = vpop.f32.mrb[0].mxu0
      %866 = vmatprep.mubr.f32.mxu0 0.0
      %867 = vmatmul.mubr.f32.gmra.mrb[0].mxu0 %v627
      %v868 = vpop.f32.mrb[0].mxu0
      %v869 = vadd.f32 %v650, %v868
      %v870 = vpop.f32.mrb[0].mxu0
      %871 = vmatprep.mubr.f32.mxu0 0.0
      %872 = vmatmul.mubr.f32.gmra.mrb[0].mxu0 %v628
      %v873 = vpop.f32.mrb[0].mxu0
      %v874 = vadd.f32 %v650, %v873
      %v875 = vpop.f32.mrb[0].mxu0
      %876 = vdwg.mxu0
      %vm877 = vcmask 7168
      %878 = vst.msk [vmem:[%s228] sm:$0xff] %vm877, %v719
      %879 = vst.msk [vmem:[%s228 + $0x8] sm:$0xff] %vm877, %v724
      %880 = vst.msk [vmem:[%s228 + $0x10] sm:$0xff] %vm877, %v729
      %881 = vst.msk [vmem:[%s228 + $0x18] sm:$0xff] %vm877, %v734
      %882 = vst.msk [vmem:[%s228 + $0x20] sm:$0xff] %vm877, %v739
      %883 = vst.msk [vmem:[%s228 + $0x28] sm:$0xff] %vm877, %v744
      %884 = vst.msk [vmem:[%s228 + $0x30] sm:$0xff] %vm877, %v749
      %885 = vst.msk [vmem:[%s228 + $0x38] sm:$0xff] %vm877, %v754
      %886 = vst.msk [vmem:[%s228 + $0x40] sm:$0xff] %vm877, %v759
      %887 = vst.msk [vmem:[%s228 + $0x48] sm:$0xff] %vm877, %v764
      %888 = vst.msk [vmem:[%s228 + $0x50] sm:$0xff] %vm877, %v769
      %889 = vst.msk [vmem:[%s228 + $0x58] sm:$0xff] %vm877, %v774
      %890 = vst.msk [vmem:[%s228 + $0x60] sm:$0xff] %vm877, %v779
      %891 = vst.msk [vmem:[%s228 + $0x68] sm:$0xff] %vm877, %v784
      %892 = vst.msk [vmem:[%s228 + $0x70] sm:$0xff] %vm877, %v789
      %893 = vst.msk [vmem:[%s228 + $0x78] sm:$0xff] %vm877, %v794
      %894 = vst.msk [vmem:[%s228 + $0x80] sm:$0xff] %vm877, %v799
      %895 = vst.msk [vmem:[%s228 + $0x88] sm:$0xff] %vm877, %v804
      %896 = vst.msk [vmem:[%s228 + $0x90] sm:$0xff] %vm877, %v809
      %897 = vst.msk [vmem:[%s228 + $0x98] sm:$0xff] %vm877, %v814
      %898 = vst.msk [vmem:[%s228 + $0xa0] sm:$0xff] %vm877, %v819
      %899 = vst.msk [vmem:[%s228 + $0xa8] sm:$0xff] %vm877, %v824
      %900 = vst.msk [vmem:[%s228 + $0xb0] sm:$0xff] %vm877, %v829
      %901 = vst.msk [vmem:[%s228 + $0xb8] sm:$0xff] %vm877, %v834
      %902 = vst.msk [vmem:[%s228 + $0xc0] sm:$0xff] %vm877, %v839
      %903 = vst.msk [vmem:[%s228 + $0xc8] sm:$0xff] %vm877, %v844
      %904 = vst.msk [vmem:[%s228 + $0xd0] sm:$0xff] %vm877, %v849
      %905 = vst.msk [vmem:[%s228 + $0xd8] sm:$0xff] %vm877, %v854
      %906 = vst.msk [vmem:[%s228 + $0xe0] sm:$0xff] %vm877, %v859
      %907 = vst.msk [vmem:[%s228 + $0xe8] sm:$0xff] %vm877, %v864
      %908 = vst.msk [vmem:[%s228 + $0xf0] sm:$0xff] %vm877, %v869
      %909 = vst.msk [vmem:[%s228 + $0xf8] sm:$0xff] %vm877, %v874
      %s910 = smul.u32 32, %s18
      %p911 = scmp.lt.s32.totalorder %s910, 63
      %s912 = scalar_select %p911, %s910, 63
      %s913 = smul.addr %s912, 8
      %s914 = scalar_lea.vmem %s5, %s913
      // Predicated region
      $region41: #{link_predictor_forward.1} parent=39 // pred_check
        %p915 = pneg %p146
      $region42: #{link_predictor_forward.1} parent=39 // pred_check_branch
        %917 = sbr.rel (%p915) target = $region44
      $region43: #{link_predictor_forward.1} parent=39 // pred_region
        %s918 = smul.u32 32, %s18
      $region44: #{link_predictor_forward.1} parent=39 // pred_fallthru
        _
    $region40: #{link_predictor_forward.1} parent=5 // pred_fallthru
      _
    %p919 = scmp.le.s32.totalorder 2, %s13
    // Predicated region
    $region45: #{link_predictor_forward.1} parent=5 // pred_check
      %p920 = pneg %p919
    $region46: #{link_predictor_forward.1} parent=5 // pred_check_branch
      %922 = sbr.rel (%p920) target = $region48
    $region47: #{link_predictor_forward.1} parent=5 // pred_region
      %s923 = ssub.s32 %s13, 2
      // Predicated region
      $region49: #{link_predictor_forward.1} parent=47 // pred_check
        %p924 = pneg %p152
      $region50: #{link_predictor_forward.1} parent=47 // pred_check_branch
        %926 = sbr.rel (%p924) target = $region52
      $region51: #{link_predictor_forward.1} parent=47 // pred_region
        %s927 = smul.u32 32, %s19
        %p928 = scmp.lt.s32.totalorder %s927, 63
        %s929 = scalar_select %p928, %s927, 63
        %s930 = smul.addr %s929, 8
        %s931 = scalar_lea.vmem %s5, %s930
      $region52: #{link_predictor_forward.1} parent=47 // pred_fallthru
        _
    $region48: #{link_predictor_forward.1} parent=5 // pred_fallthru
      _
  $region6: #{link_predictor_forward.1} parent=0 // loop_footer
    %s17 = sadd.s32 1, %s13
  $region7: #{link_predictor_forward.1} parent=0 // loop_footer_branch
    %12 = sbr.rel target = $region3
  $region8: #{link_predictor_forward.1} parent=0 // loop_exit
    _

</llo_original>
